<compile_context>
chip_gen: v7x
topology: tpu7x:2x2x1
jax: 0.10.0
libtpu: 0.0.40
codegen_flags: <defaults>
</compile_context>

<pallas_src>
import jax
import jax.numpy as jnp
from jax.experimental import pallas as pl
from jax.experimental.pallas import tpu as pltpu

# ---------------- sizes (small, deterministic) ----------------
N_EV   = 8                      # evidence snippets per claim (fixed)
E_DIM  = 48                     # claim / evidence encoding dim
M_DIM  = 32                     # metadata encoding dim
D_DIM  = 2 * E_DIM + M_DIM      # instance encoding dim (concat) = 128
L_ALL  = 32                     # total labels (labelEmbedding output)
L_DOM  = 8                      # labels of this domain (labelMaskDomain output)
L_PAD  = 128                    # lane-dense fused output width (labels + rank + pad)
DOMAIN_IDX = tuple(range(3, L_ALL, 4))[:L_DOM]     # static stride-4 domain label indices
assert len(tuple(range(3, L_ALL, 4))) >= L_DOM, "domain must have >= L_DOM labels"

TILE_ROWS       = 128                      # evidence rows per grid step
CLAIMS_PER_TILE = TILE_ROWS // N_EV        # 16 claims per grid step
assert TILE_ROWS % N_EV == 0 and CLAIMS_PER_TILE % 8 == 0


# ---------------- Pallas kernel: batched, fused per-evidence hot path ----------------
def _verification_kernel(ev_ref, base_ref, w_ref, expand_ref, reduce_ref, out_ref):
    # ev_ref     : (TILE_ROWS, E_DIM)  bf16   evidence encodings (row = one claim/evidence pair)
    # base_ref   : (CPT, L_PAD)        f32    per-claim claim/metadata/bias contribution
    # w_ref      : (E_DIM, L_PAD)      bf16   fused [labelEmbedding(domain) | evidenceRanker] weights
    # expand_ref : (TILE_ROWS, CPT)    f32    claim -> evidence-row expansion matrix
    # reduce_ref : (CPT, TILE_ROWS)    f32    evidence-row -> claim reduction matrix
    # out_ref    : (CPT, L_PAD)        f32    per-claim distribution (lane-dense, cols [0:L_DOM] used)

    # fused GEMM (bf16 operands, f32 accumulation): evidence part of both linear layers
    z = jnp.dot(ev_ref[...], w_ref[...], preferred_element_type=jnp.float32)
    # add the per-claim base, expanded to this claim's evidence rows via a tiny MXU matmul
    z = z + jnp.dot(expand_ref[...], base_ref[...], preferred_element_type=jnp.float32)

    # evidenceRanker: the rank logit lives in fused column L_DOM
    rank = jax.nn.sigmoid(z[:, L_DOM:L_DOM + 1])                    # (TILE_ROWS, 1)

    # labelMaskDomain + softmax over the L_DOM domain labels (mask rank/pad lanes)
    lane = jax.lax.broadcasted_iota(jnp.int32, z.shape, 1)
    s = jnp.where(lane < L_DOM, z, -1e30)
    s = s - jnp.max(s, axis=-1, keepdims=True)
    p = jnp.exp(s)
    p = p * pl.reciprocal(jnp.sum(p, axis=-1, keepdims=True), approx=True)

    weighted = rank * p                                             # (TILE_ROWS, L_PAD)
    # distribution_c = sum over that claim's evidences (MXU reduction, output stays lane-dense)
    out_ref[...] = jnp.dot(reduce_ref[...], weighted, preferred_element_type=jnp.float32)


# ---------------- parameter prep (hoisted: run once per domain, not per forward) ----------------
def fuse_domain_params(w_rank, b_rank, W_label, b_label):
    # labelMaskDomain: static stride-4 column slice (no gather, no per-call copy)
    W_dom = W_label[:, 3:3 + 4 * L_DOM:4]                            # (D, L_DOM)
    b_dom = b_label[3:3 + 4 * L_DOM:4]                               # (L_DOM,)

    # fuse evidenceRanker as column L_DOM of the domain label weights, pad lane-dense
    W_fused = jnp.concatenate([W_dom, w_rank[:, None]], axis=1)      # (D, L_DOM+1)
    W_fused = jnp.pad(W_fused, ((0, 0), (0, L_PAD - (L_DOM + 1))))   # (D, L_PAD)
    b_fused = jnp.concatenate([b_dom, jnp.reshape(b_rank, (1,))])
    b_fused = jnp.pad(b_fused, (0, L_PAD - (L_DOM + 1))).astype(jnp.float32)

    # split rows by the concat structure [claim | evidence | metadata]
    W_claim = W_fused[:E_DIM].astype(jnp.float32)                    # (E_DIM, L_PAD)
    W_ev    = W_fused[E_DIM:2 * E_DIM].astype(jnp.bfloat16)          # (E_DIM, L_PAD) bf16 -> MXU
    W_meta  = W_fused[2 * E_DIM:].astype(jnp.float32)                # (M_DIM, L_PAD)
    return W_claim, W_ev, W_meta, b_fused


# ---------------- forward wrapper ----------------
def verification_forward(claim_encs, evidence_encs, metadata_encs, fused_params):
    """Batched verifactionModel.forward: returns (B, L_DOM) distributions, one per claim."""
    W_claim, W_ev_bf16, W_meta, b_fused = fused_params
    B = claim_encs.shape[0]

    # per-claim contribution of claim/metadata/bias to the fused logits
    # (identical across that claim's evidences -> computed once, not N_EV times)
    base = (claim_encs.astype(jnp.float32) @ W_claim
            + metadata_encs.astype(jnp.float32) @ W_meta
            + b_fused[None, :])                                      # (B, L_PAD) f32

    # pad the claim batch to a whole number of row tiles
    B_pad = pl.cdiv(B, CLAIMS_PER_TILE) * CLAIMS_PER_TILE
    base = jnp.pad(base, ((0, B_pad - B), (0, 0)))
    ev = jnp.pad(evidence_encs.astype(jnp.float32),
                 ((0, B_pad - B), (0, 0), (0, 0)))
    ev = ev.reshape(B_pad * N_EV, E_DIM).astype(jnp.bfloat16)        # (rows, E_DIM) bf16
    num_tiles = B_pad // CLAIMS_PER_TILE

    # claim <-> evidence-row group matrices (built once per call; tiny)
    row_claim = jnp.arange(TILE_ROWS, dtype=jnp.int32) // N_EV
    col_claim = jnp.arange(CLAIMS_PER_TILE, dtype=jnp.int32)
    expand_mat = (row_claim[:, None] == col_claim[None, :]).astype(jnp.float32)  # (TILE, CPT)
    reduce_mat = expand_mat.T                                                     # (CPT, TILE)

    out = pl.pallas_call(
        _verification_kernel,
        out_shape=jax.ShapeDtypeStruct((B_pad, L_PAD), jnp.float32),
        grid=(num_tiles,),
        in_specs=[
            pl.BlockSpec((TILE_ROWS, E_DIM), lambda t: (t, 0)),
            pl.BlockSpec((CLAIMS_PER_TILE, L_PAD), lambda t: (t, 0)),
            pl.BlockSpec((E_DIM, L_PAD), lambda t: (0, 0)),
            pl.BlockSpec((TILE_ROWS, CLAIMS_PER_TILE), lambda t: (0, 0)),
            pl.BlockSpec((CLAIMS_PER_TILE, TILE_ROWS), lambda t: (0, 0)),
        ],
        out_specs=pl.BlockSpec((CLAIMS_PER_TILE, L_PAD), lambda t: (t, 0)),
        compiler_params=pltpu.CompilerParams(
            dimension_semantics=("parallel",)),
    )(ev, base, W_ev_bf16, expand_mat, reduce_mat)

    return out[:B, :L_DOM]


# ---------------- pure-JAX f32 reference (original module semantics) ----------------
def _reference(claim_encs, evidence_encs, metadata_encs, w_rank, b_rank, W_label, b_label):
    B = claim_encs.shape[0]
    idx = jnp.asarray(DOMAIN_IDX, dtype=jnp.int32)
    x = jnp.concatenate(
        [jnp.broadcast_to(claim_encs[:, None, :], (B, N_EV, E_DIM)),
         evidence_encs,
         jnp.broadcast_to(metadata_encs[:, None, :], (B, N_EV, M_DIM))],
        axis=-1)                                                     # (B, N_EV, D)
    rank = jax.nn.sigmoid(x @ w_rank + b_rank)                       # (B, N_EV)
    logits = x @ W_label + b_label                                   # (B, N_EV, L_ALL)
    dom = jax.nn.softmax(logits[..., idx], axis=-1)                  # (B, N_EV, L_DOM)
    return jnp.sum(rank[..., None] * dom, axis=1)                    # (B, L_DOM)


if __name__ == "__main__":
    key = jax.random.PRNGKey(0)
    k1, k2, k3, k4, k5, k6 = jax.random.split(key, 6)

    B = 32   # claims per batch -> 256 evidence rows -> 2 row tiles

    # deterministic "encoder" outputs and parameters
    claim_encs    = jax.random.normal(k1, (B, E_DIM), jnp.float32)
    evidence_encs = jax.random.normal(k2, (B, N_EV, E_DIM), jnp.float32)
    metadata_encs = jax.random.normal(k3, (B, M_DIM), jnp.float32)

    w_rank  = 0.1 * jax.random.normal(k4, (D_DIM,), jnp.float32)
    b_rank  = jnp.float32(0.05)
    W_label = 0.1 * jax.random.normal(k5, (D_DIM, L_ALL), jnp.float32)
    b_label = 0.01 * jax.random.normal(k6, (L_ALL,), jnp.float32)

    fused = fuse_domain_params(w_rank, b_rank, W_label, b_label)     # hoisted once
    out = verification_forward(claim_encs, evidence_encs, metadata_encs, fused)
    out = jax.block_until_ready(out)

    ref = _reference(claim_encs, evidence_encs, metadata_encs,
                     w_rank, b_rank, W_label, b_label)
    assert out.shape == (B, L_DOM)
    # tolerance relaxed for bf16 operands + approx reciprocal
    assert jnp.allclose(out, ref, atol=3e-2, rtol=3e-2), (out, ref)
    print("KERNEL_OK")
</pallas_src>

<mosaic_0001>
module attributes {stable_mosaic.version = 11 : i64} {
  func.func @_verification_kernel(%arg0: i32, %arg1: memref<128x48xbf16, #tpu.memory_space<vmem>>, %arg2: memref<16x128xf32, #tpu.memory_space<vmem>>, %arg3: memref<48x128xbf16, #tpu.memory_space<vmem>>, %arg4: memref<128x16xf32, #tpu.memory_space<vmem>>, %arg5: memref<16x128xf32, #tpu.memory_space<vmem>>, %arg6: memref<16x128xf32, #tpu.memory_space<vmem>>) attributes {dimension_semantics = [#tpu.dimension_semantics<parallel>], iteration_bounds = array<i64: 2>, scalar_prefetch = 0 : i64, scratch_operands = 0 : i64, tpu.core_type = #tpu.core_type<tc>, window_params = [{transform_indices = @transform_0, window_bounds = array<i64: 128, 48>}, {transform_indices = @transform_1, window_bounds = array<i64: 16, 128>}, {pipeline_mode = #tpu.pipeline_mode<synchronous>, transform_indices = @transform_2, window_bounds = array<i64: 48, 128>}, {pipeline_mode = #tpu.pipeline_mode<synchronous>, transform_indices = @transform_3, window_bounds = array<i64: 128, 16>}, {pipeline_mode = #tpu.pipeline_mode<synchronous>, transform_indices = @transform_4, window_bounds = array<i64: 16, 128>}, {transform_indices = @transform_5, window_bounds = array<i64: 16, 128>}]} {
    %c0 = arith.constant 0 : index
    %c0_0 = arith.constant 0 : index
    %0 = vector.load %arg1[%c0, %c0_0] : memref<128x48xbf16, #tpu.memory_space<vmem>>, vector<128x48xbf16>
    %c0_1 = arith.constant 0 : index
    %c0_2 = arith.constant 0 : index
    %1 = vector.load %arg3[%c0_1, %c0_2] : memref<48x128xbf16, #tpu.memory_space<vmem>>, vector<48x128xbf16>
    %cst = arith.constant dense<0.000000e+00> : vector<128x128xf32>
    %2 = tpu.matmul %0, %1, %cst {dimension_numbers = #tpu.dot_dimension_numbers<[1], [0], [0], [1], [0, 0, 1, 1], [], []>} : vector<128x48xbf16>, vector<48x128xbf16>, vector<128x128xf32> -> vector<128x128xf32>
    %c0_3 = arith.constant 0 : index
    %c0_4 = arith.constant 0 : index
    %3 = vector.load %arg4[%c0_3, %c0_4] : memref<128x16xf32, #tpu.memory_space<vmem>>, vector<128x16xf32>
    %c0_5 = arith.constant 0 : index
    %c0_6 = arith.constant 0 : index
    %4 = vector.load %arg2[%c0_5, %c0_6] : memref<16x128xf32, #tpu.memory_space<vmem>>, vector<16x128xf32>
    %cst_7 = arith.constant dense<0.000000e+00> : vector<128x128xf32>
    %5 = tpu.matmul %3, %4, %cst_7 {dimension_numbers = #tpu.dot_dimension_numbers<[1], [0], [0], [1], [0, 0, 1, 1], [], []>} : vector<128x16xf32>, vector<16x128xf32>, vector<128x128xf32> -> vector<128x128xf32>
    %6 = arith.addf %2, %5 : vector<128x128xf32>
    %7 = vector.extract_strided_slice %6 {offsets = [0, 8], sizes = [128, 1], strides = [1, 1]} : vector<128x128xf32> to vector<128x1xf32>
    %8 = arith.negf %7 : vector<128x1xf32>
    %9 = math.exp %8 : vector<128x1xf32>
    %cst_8 = arith.constant 1.000000e+00 : f32
    %10 = vector.broadcast %cst_8 : f32 to vector<128x1xf32>
    %11 = arith.addf %10, %9 : vector<128x1xf32>
    %12 = arith.divf %10, %11 : vector<128x1xf32>
    %13 = tpu.iota {dimensions = array<i32: 1>} : vector<128x128xi32>
    %c8_i32 = arith.constant 8 : i32
    %14 = vector.broadcast %c8_i32 : i32 to vector<128x128xi32>
    %15 = arith.cmpi slt, %13, %14 : vector<128x128xi32>
    %cst_9 = arith.constant -1.000000e+30 : f32
    %16 = vector.broadcast %cst_9 : f32 to vector<128x128xf32>
    %17 = arith.select %15, %6, %16 : vector<128x128xi1>, vector<128x128xf32>
    %cst_10 = arith.constant dense<0xFF800000> : vector<128xf32>
    %18 = vector.multi_reduction <maximumf>, %17, %cst_10 [1] : vector<128x128xf32> to vector<128xf32>
    %19 = vector.shape_cast %18 : vector<128xf32> to vector<128x1xf32>
    %20 = vector.broadcast %19 : vector<128x1xf32> to vector<128x128xf32>
    %21 = arith.subf %17, %20 : vector<128x128xf32>
    %22 = math.exp %21 : vector<128x128xf32>
    %cst_11 = arith.constant dense<0.000000e+00> : vector<128xf32>
    %23 = vector.multi_reduction <add>, %22, %cst_11 [1] : vector<128x128xf32> to vector<128xf32>
    %24 = vector.shape_cast %23 : vector<128xf32> to vector<128x1xf32>
    %25 = tpu.reciprocal %24 {approx = true} : vector<128x1xf32> -> vector<128x1xf32>
    %26 = vector.broadcast %25 : vector<128x1xf32> to vector<128x128xf32>
    %27 = arith.mulf %22, %26 : vector<128x128xf32>
    %28 = vector.broadcast %12 : vector<128x1xf32> to vector<128x128xf32>
    %29 = arith.mulf %28, %27 : vector<128x128xf32>
    %c0_12 = arith.constant 0 : index
    %c0_13 = arith.constant 0 : index
    %30 = vector.load %arg5[%c0_12, %c0_13] : memref<16x128xf32, #tpu.memory_space<vmem>>, vector<16x128xf32>
    %cst_14 = arith.constant dense<0.000000e+00> : vector<16x128xf32>
    %31 = tpu.matmul %30, %29, %cst_14 {dimension_numbers = #tpu.dot_dimension_numbers<[1], [0], [0], [1], [0, 0, 1, 1], [], []>} : vector<16x128xf32>, vector<128x128xf32>, vector<16x128xf32> -> vector<16x128xf32>
    %c0_15 = arith.constant 0 : index
    %c0_16 = arith.constant 0 : index
    %32 = vector.load %arg6[%c0_15, %c0_16] : memref<16x128xf32, #tpu.memory_space<vmem>>, vector<16x128xf32>
    tpu.vector_store %arg6[%c0_15, %c0_16], %31 {strides = array<i32>} : memref<16x128xf32, #tpu.memory_space<vmem>>, vector<16x128xf32>,
    return
  }
  func.func @transform_0(%arg0: i32) -> (i32, i32) {
    %c0_i32 = arith.constant 0 : i32
    %c0_i32_0 = arith.constant 0 : i32
    return %arg0, %c0_i32 : i32, i32
  }
  func.func @transform_1(%arg0: i32) -> (i32, i32) {
    %c0_i32 = arith.constant 0 : i32
    %c0_i32_0 = arith.constant 0 : i32
    return %arg0, %c0_i32 : i32, i32
  }
  func.func @transform_2(%arg0: i32) -> (i32, i32) {
    %c0_i32 = arith.constant 0 : i32
    %c0_i32_0 = arith.constant 0 : i32
    %c0_i32_1 = arith.constant 0 : i32
    return %c0_i32, %c0_i32_0 : i32, i32
  }
  func.func @transform_3(%arg0: i32) -> (i32, i32) {
    %c0_i32 = arith.constant 0 : i32
    %c0_i32_0 = arith.constant 0 : i32
    %c0_i32_1 = arith.constant 0 : i32
    return %c0_i32, %c0_i32_0 : i32, i32
  }
  func.func @transform_4(%arg0: i32) -> (i32, i32) {
    %c0_i32 = arith.constant 0 : i32
    %c0_i32_0 = arith.constant 0 : i32
    %c0_i32_1 = arith.constant 0 : i32
    return %c0_i32, %c0_i32_0 : i32, i32
  }
  func.func @transform_5(%arg0: i32) -> (i32, i32) {
    %c0_i32 = arith.constant 0 : i32
    %c0_i32_0 = arith.constant 0 : i32
    return %arg0, %c0_i32 : i32, i32
  }
}

</mosaic_0001>

<llo_original>
// kernel: tpu_custom_call.1
$region0: #{tpu_custom_call.1}
  #allocation0 [shape = 'u32[]', space=smem, size = 0x4, offset = 0x4, fixed_abs, tag = 'smem constant byte address 0x4 - core index']
  #allocation1 [shape = 'u32[144,128]{1,0:T(1,128)}', space=vmem, size = 0x12000, scoped, tag = 'internal scratch']
  %s0 = inlined_call_operand.vmem [shape: bf16[256,48], index: 0, kind: input, shape index: {}]
  %s1 = inlined_call_operand.vmem [shape: f32[32,128], index: 1, kind: input, shape index: {}]
  %s2 = inlined_call_operand.vmem [shape: bf16[48,128], index: 2, kind: input, shape index: {}]
  %s3 = inlined_call_operand.vmem [shape: f32[128,16], index: 3, kind: input, shape index: {}]
  %s4 = inlined_call_operand.vmem [shape: f32[16,128], index: 4, kind: input, shape index: {}]
  %s5 = inlined_call_operand.hbm [shape: f32[32,128], index: 5, kind: output, shape index: {}]
  %s6 = sld [smem:[#allocation0]]
  $region53: #{tpu_custom_call.1} parent=0
    _
  %s8 = ssub.s32 1, %s6
  %s9 = scalar_select 0, %s8, %s6
  $region1: #{tpu_custom_call.1} parent=0
    #allocation2 [shape = 'u8[16384]{0}', space=vmem, size = 0x4000, scoped, tag = 'output window, operand 0']
    #allocation3 [shape = 's32[2]{0}', space=sflag, size = 0x8, scoped, tag = 'scoped memory for tpu_custom_call.1']
    %10 = vsyncpa [#allocation3], 0
    %s11 = scalar_lea.sflag [#allocation3], 1
    %12 = vsyncpa %s11, 0
    loop: start=0, step=1, limit=4
    $region2: #{tpu_custom_call.1} parent=1 // loop_pre_header
      _
    $region3: #{tpu_custom_call.1} parent=1 // loop_header
      %s14 = sphi 0, %s18
      %p15 = scmp.ge.s32.totalorder %s14, 4
      %s24 = sphi 0, %s26
      %s27 = sphi 0, %s24
      %s28 = sphi 0, %s27
      %s44 = sphi 0, %s28
      %s50 = sphi 0, %s52
      %s53 = sphi 0, %s50
      %s54 = sphi 0, %s53
      %s70 = sphi 0, %s54
      %s74 = sphi 0, %s74
      %s76 = sphi 0, %s74
      %s77 = sphi 0, %s76
      %s91 = sphi 0, %s77
      %s95 = sphi 0, %s95
      %s97 = sphi 0, %s95
      %s98 = sphi 0, %s97
      %s112 = sphi 0, %s98
      %s116 = sphi 0, %s116
      %s118 = sphi 0, %s116
      %s119 = sphi 0, %s118
      %s133 = sphi 0, %s119
      %s139 = sphi 0, %s141
      %s142 = sphi 0, %s139
      %s143 = sphi 0, %s142
      %s159 = sphi 0, %s143
    $region4: #{tpu_custom_call.1} parent=1 // loop_header_branch
      %17 = sbr.rel (%p15) target = $region8
    $region5: #{tpu_custom_call.1} parent=1 // loop_body
      %s19 = ssub.s32 %s14, 1
      %s20 = ssub.s32 %s14, 2
      %s21 = sadd.s32 %s14, 1
      %s22 = ssub.s32 %s14, %s21
      %p23 = scmp.eq.s32.totalorder %s22, 0
      %s25 = sadd.s32 %s24, 1
      %s26 = scalar_select %p23, %s24, %s25
      %p29 = pneg %p23
      %p30 = scmp.eq.s32.totalorder %s14, 1
      %p31 = por %p29, %p30
      %p32 = scmp.ne.s32.totalorder %s24, %s27
      %p33 = scmp.eq.s32.totalorder %s14, 0
      %p34 = por %p32, %p33
      %p35 = scmp.ne.s32.totalorder %s24, %s27
      %p36 = scmp.eq.s32.totalorder %s19, 1
      %p37 = por %p35, %p36
      %p38 = scmp.ne.s32.totalorder %s27, %s28
      %p39 = scmp.eq.s32.totalorder %s19, 0
      %p40 = por %p38, %p39
      %p41 = scmp.ne.s32.totalorder %s27, %s28
      %p42 = scmp.eq.s32.totalorder %s20, 1
      %p43 = por %p41, %p42
      %p45 = scmp.ne.s32.totalorder %s28, %s44
      %p46 = scmp.eq.s32.totalorder %s20, 0
      %p47 = por %p45, %p46
      %s48 = ssub.s32 %s14, %s21
      %p49 = scmp.eq.s32.totalorder %s48, 0
      %s51 = sadd.s32 %s50, 1
      %s52 = scalar_select %p49, %s50, %s51
      %p55 = pneg %p49
      %p56 = scmp.eq.s32.totalorder %s14, 1
      %p57 = por %p55, %p56
      %p58 = scmp.ne.s32.totalorder %s50, %s53
      %p59 = scmp.eq.s32.totalorder %s14, 0
      %p60 = por %p58, %p59
      %p61 = scmp.ne.s32.totalorder %s50, %s53
      %p62 = scmp.eq.s32.totalorder %s19, 1
      %p63 = por %p61, %p62
      %p64 = scmp.ne.s32.totalorder %s53, %s54
      %p65 = scmp.eq.s32.totalorder %s19, 0
      %p66 = por %p64, %p65
      %p67 = scmp.ne.s32.totalorder %s53, %s54
      %p68 = scmp.eq.s32.totalorder %s20, 1
      %p69 = por %p67, %p68
      %p71 = scmp.ne.s32.totalorder %s54, %s70
      %p72 = scmp.eq.s32.totalorder %s20, 0
      %p73 = por %p71, %p72
      %s75 = sadd.s32 %s74, 1
      %p78 = scmp.eq.s32.totalorder %s14, 1
      %p79 = scmp.ne.s32.totalorder %s74, %s76
      %p80 = scmp.eq.s32.totalorder %s14, 0
      %p81 = por %p79, %p80
      %p82 = scmp.ne.s32.totalorder %s74, %s76
      %p83 = scmp.eq.s32.totalorder %s19, 1
      %p84 = por %p82, %p83
      %p85 = scmp.ne.s32.totalorder %s76, %s77
      %p86 = scmp.eq.s32.totalorder %s19, 0
      %p87 = por %p85, %p86
      %p88 = scmp.ne.s32.totalorder %s76, %s77
      %p89 = scmp.eq.s32.totalorder %s20, 1
      %p90 = por %p88, %p89
      %p92 = scmp.ne.s32.totalorder %s77, %s91
      %p93 = scmp.eq.s32.totalorder %s20, 0
      %p94 = por %p92, %p93
      %s96 = sadd.s32 %s95, 1
      %p99 = scmp.eq.s32.totalorder %s14, 1
      %p100 = scmp.ne.s32.totalorder %s95, %s97
      %p101 = scmp.eq.s32.totalorder %s14, 0
      %p102 = por %p100, %p101
      %p103 = scmp.ne.s32.totalorder %s95, %s97
      %p104 = scmp.eq.s32.totalorder %s19, 1
      %p105 = por %p103, %p104
      %p106 = scmp.ne.s32.totalorder %s97, %s98
      %p107 = scmp.eq.s32.totalorder %s19, 0
      %p108 = por %p106, %p107
      %p109 = scmp.ne.s32.totalorder %s97, %s98
      %p110 = scmp.eq.s32.totalorder %s20, 1
      %p111 = por %p109, %p110
      %p113 = scmp.ne.s32.totalorder %s98, %s112
      %p114 = scmp.eq.s32.totalorder %s20, 0
      %p115 = por %p113, %p114
      %s117 = sadd.s32 %s116, 1
      %p120 = scmp.eq.s32.totalorder %s14, 1
      %p121 = scmp.ne.s32.totalorder %s116, %s118
      %p122 = scmp.eq.s32.totalorder %s14, 0
      %p123 = por %p121, %p122
      %p124 = scmp.ne.s32.totalorder %s116, %s118
      %p125 = scmp.eq.s32.totalorder %s19, 1
      %p126 = por %p124, %p125
      %p127 = scmp.ne.s32.totalorder %s118, %s119
      %p128 = scmp.eq.s32.totalorder %s19, 0
      %p129 = por %p127, %p128
      %p130 = scmp.ne.s32.totalorder %s118, %s119
      %p131 = scmp.eq.s32.totalorder %s20, 1
      %p132 = por %p130, %p131
      %p134 = scmp.ne.s32.totalorder %s119, %s133
      %p135 = scmp.eq.s32.totalorder %s20, 0
      %p136 = por %p134, %p135
      %s137 = ssub.s32 %s14, %s21
      %p138 = scmp.eq.s32.totalorder %s137, 0
      %s140 = sadd.s32 %s139, 1
      %s141 = scalar_select %p138, %s139, %s140
      %p144 = pneg %p138
      %p145 = scmp.eq.s32.totalorder %s14, 1
      %p146 = por %p144, %p145
      %p147 = scmp.ne.s32.totalorder %s139, %s142
      %p148 = scmp.eq.s32.totalorder %s14, 0
      %p149 = por %p147, %p148
      %p150 = scmp.ne.s32.totalorder %s139, %s142
      %p151 = scmp.eq.s32.totalorder %s19, 1
      %p152 = por %p150, %p151
      %p153 = scmp.ne.s32.totalorder %s142, %s143
      %p154 = scmp.eq.s32.totalorder %s19, 0
      %p155 = por %p153, %p154
      %p156 = scmp.ne.s32.totalorder %s142, %s143
      %p157 = scmp.eq.s32.totalorder %s20, 1
      %p158 = por %p156, %p157
      %p160 = scmp.ne.s32.totalorder %s143, %s159
      %p161 = scmp.eq.s32.totalorder %s20, 0
      %p162 = por %p160, %p161
      %p163 = scmp.le.s32.totalorder 1, %s14
      %p164 = scmp.lt.s32.totalorder %s14, 3
      %p165 = pnand %p163, %p164
      %p166 = pneg %p165
      // Predicated region
      $region9: #{tpu_custom_call.1} parent=5 // pred_check
        _
      $region10: #{tpu_custom_call.1} parent=5 // pred_check_branch
        %168 = sbr.rel (%p165) target = $region12
      $region11: #{tpu_custom_call.1} parent=5 // pred_region
        %s169 = ssub.s32 %s14, 1
        // Predicated region
        $region13: #{tpu_custom_call.1} parent=11 // pred_check
          %p170 = pneg %p87
        $region14: #{tpu_custom_call.1} parent=11 // pred_check_branch
          %172 = sbr.rel (%p170) target = $region16
        $region15: #{tpu_custom_call.1} parent=11 // pred_region
          _
        $region16: #{tpu_custom_call.1} parent=11 // pred_fallthru
          _
        // Predicated region
        $region17: #{tpu_custom_call.1} parent=11 // pred_check
          %p173 = pneg %p108
        $region18: #{tpu_custom_call.1} parent=11 // pred_check_branch
          %175 = sbr.rel (%p173) target = $region20
        $region19: #{tpu_custom_call.1} parent=11 // pred_region
          _
        $region20: #{tpu_custom_call.1} parent=11 // pred_fallthru
          _
        // Predicated region
        $region21: #{tpu_custom_call.1} parent=11 // pred_check
          %p176 = pneg %p129
        $region22: #{tpu_custom_call.1} parent=11 // pred_check_branch
          %178 = sbr.rel (%p176) target = $region24
        $region23: #{tpu_custom_call.1} parent=11 // pred_region
          _
        $region24: #{tpu_custom_call.1} parent=11 // pred_fallthru
          _
      $region12: #{tpu_custom_call.1} parent=5 // pred_fallthru
        _
      %p179 = scmp.lt.s32.totalorder %s14, 2
      // Predicated region
      $region25: #{tpu_custom_call.1} parent=5 // pred_check
        %p180 = pneg %p179
      $region26: #{tpu_custom_call.1} parent=5 // pred_check_branch
        %182 = sbr.rel (%p180) target = $region28
      $region27: #{tpu_custom_call.1} parent=5 // pred_region
        // Predicated region
        $region29: #{tpu_custom_call.1} parent=27 // pred_check
          %p183 = pneg %p34
        $region30: #{tpu_custom_call.1} parent=27 // pred_check_branch
          %185 = sbr.rel (%p183) target = $region32
        $region31: #{tpu_custom_call.1} parent=27 // pred_region
          %s186 = smul.u32 16, %s14
          %p187 = scmp.lt.s32.totalorder %s186, 31
          %s188 = scalar_select %p187, %s186, 31
          %s189 = smul.addr %s188, 4
          %s190 = scalar_lea.vmem %s0, %s189
          %s191 = smul.u32 16, %s14
        $region32: #{tpu_custom_call.1} parent=27 // pred_fallthru
          _
        // Predicated region
        $region33: #{tpu_custom_call.1} parent=27 // pred_check
          %p192 = pneg %p60
        $region34: #{tpu_custom_call.1} parent=27 // pred_check_branch
          %194 = sbr.rel (%p192) target = $region36
        $region35: #{tpu_custom_call.1} parent=27 // pred_region
          %s195 = smul.u32 2, %s14
          %p196 = scmp.lt.s32.totalorder %s195, 3
          %s197 = scalar_select %p196, %s195, 3
          %s198 = smul.addr %s197, 8
          %s199 = scalar_lea.vmem %s1, %s198
          %s200 = smul.u32 2, %s14
        $region36: #{tpu_custom_call.1} parent=27 // pred_fallthru
          _
      $region28: #{tpu_custom_call.1} parent=5 // pred_fallthru
        _
      %p201 = scmp.le.s32.totalorder 1, %s14
      %p202 = scmp.lt.s32.totalorder %s14, 3
      %p203 = pnand %p201, %p202
      %p204 = pneg %p203
      // Predicated region
      $region37: #{tpu_custom_call.1} parent=5 // pred_check
        _
      $region38: #{tpu_custom_call.1} parent=5 // pred_check_branch
        %206 = sbr.rel (%p203) target = $region40
      $region39: #{tpu_custom_call.1} parent=5 // pred_region
        %s207 = ssub.s32 %s14, 1
        %s208 = smul.u32 16, %s19
        %p209 = scmp.lt.s32.totalorder %s208, 31
        %s210 = scalar_select %p209, %s208, 31
        %s211 = smul.addr %s210, 4
        %s212 = scalar_lea.vmem %s0, %s211
        %p213 = pneg %p40
        %p214 = pneg %p37
        %s215 = smul.u32 2, %s19
        %p216 = scmp.lt.s32.totalorder %s215, 3
        %s217 = scalar_select %p216, %s215, 3
        %s218 = smul.addr %s217, 8
        %s219 = scalar_lea.vmem %s1, %s218
        %p220 = pneg %p66
        %p221 = pneg %p63
        %p222 = pneg %p87
        %p223 = pneg %p84
        %p224 = pneg %p108
        %p225 = pneg %p105
        %p226 = pneg %p129
        %p227 = pneg %p126
        %p228 = pneg %p155
        %p229 = pneg %p152
        %s230 = sand.u32 %s142, 1
        %s231 = scalar_lea.sflag [#allocation3], %s230
        %s232 = sand.u32 %s142, 1
        %s233 = smul.addr %s232, 16
        %s234 = scalar_lea.vmem [#allocation2], %s233
        %s235 = smul.u32 16, %s19
        %p236 = scmp.lt.s32.totalorder %s235, 31
        %s237 = scalar_select %p236, %s235, 31
        %s238 = smul.addr %s237, 4
        %s239 = scalar_lea.vmem %s0, %s238
        %s240 = smul.u32 16, %s19
        %s241 = smul.u32 2, %s19
        %p242 = scmp.lt.s32.totalorder %s241, 3
        %s243 = scalar_select %p242, %s241, 3
        %s244 = smul.addr %s243, 8
        %s245 = scalar_lea.vmem %s1, %s244
        %s246 = smul.u32 2, %s19
        %s247 = smul.u32 2, %s19
        %v249 = vld [vmem:[%s239] sm:$0xf]
        %v250 = vld [vmem:[%s239 + $0x4] sm:$0xf]
        %v251 = vld [vmem:[%s239 + $0x8] sm:$0xf]
        %v252 = vld [vmem:[%s239 + $0xc] sm:$0xf]
        %v253 = vld [vmem:[%s239 + $0x10] sm:$0xf]
        %v254 = vld [vmem:[%s239 + $0x14] sm:$0xf]
        %v255 = vld [vmem:[%s239 + $0x18] sm:$0xf]
        %v256 = vld [vmem:[%s239 + $0x1c] sm:$0xf]
        %v257 = vld [vmem:[%s239 + $0x20] sm:$0xf]
        %v258 = vld [vmem:[%s239 + $0x24] sm:$0xf]
        %v259 = vld [vmem:[%s239 + $0x28] sm:$0xf]
        %v260 = vld [vmem:[%s239 + $0x2c] sm:$0xf]
        %v261 = vld [vmem:[%s239 + $0x30] sm:$0xf]
        %v262 = vld [vmem:[%s239 + $0x34] sm:$0xf]
        %v263 = vld [vmem:[%s239 + $0x38] sm:$0xf]
        %v264 = vld [vmem:[%s239 + $0x3c] sm:$0xf]
        %v265 = vld [vmem:[%s2] sm:$0xf]
        %v266 = vld [vmem:[%s2 + $0x4] sm:$0xf]
        %v267 = vld [vmem:[%s2 + $0x8] sm:$0xf]
        %v268 = vld [vmem:[%s2 + $0xc] sm:$0xf]
        %v269 = vld [vmem:[%s2 + $0x10] sm:$0xf]
        %v270 = vld [vmem:[%s2 + $0x14] sm:$0xf]
        %v271 = vld [vmem:[%s3] sm:$0xff]
        %v272 = vld [vmem:[%s3 + $0x8] sm:$0xff]
        %v273 = vld [vmem:[%s3 + $0x10] sm:$0xff]
        %v274 = vld [vmem:[%s3 + $0x18] sm:$0xff]
        %v275 = vld [vmem:[%s3 + $0x20] sm:$0xff]
        %v276 = vld [vmem:[%s3 + $0x28] sm:$0xff]
        %v277 = vld [vmem:[%s3 + $0x30] sm:$0xff]
        %v278 = vld [vmem:[%s3 + $0x38] sm:$0xff]
        %v279 = vld [vmem:[%s3 + $0x40] sm:$0xff]
        %v280 = vld [vmem:[%s3 + $0x48] sm:$0xff]
        %v281 = vld [vmem:[%s3 + $0x50] sm:$0xff]
        %v282 = vld [vmem:[%s3 + $0x58] sm:$0xff]
        %v283 = vld [vmem:[%s3 + $0x60] sm:$0xff]
        %v284 = vld [vmem:[%s3 + $0x68] sm:$0xff]
        %v285 = vld [vmem:[%s3 + $0x70] sm:$0xff]
        %v286 = vld [vmem:[%s3 + $0x78] sm:$0xff]
        %v287 = vld [vmem:[%s245] sm:$0xff]
        %v288 = vld [vmem:[%s245 + $0x8] sm:$0xff]
        %vm289 = vcmask 130048
        %v291 = vsel %vm289, %v271, 0
        %v294 = vsel %vm289, %v272, 0
        %v297 = vsel %vm289, %v273, 0
        %v300 = vsel %vm289, %v274, 0
        %v303 = vsel %vm289, %v275, 0
        %v306 = vsel %vm289, %v276, 0
        %v309 = vsel %vm289, %v277, 0
        %v312 = vsel %vm289, %v278, 0
        %v315 = vsel %vm289, %v279, 0
        %v318 = vsel %vm289, %v280, 0
        %v321 = vsel %vm289, %v281, 0
        %v324 = vsel %vm289, %v282, 0
        %v327 = vsel %vm289, %v283, 0
        %v330 = vsel %vm289, %v284, 0
        %v333 = vsel %vm289, %v285, 0
        %v336 = vsel %vm289, %v286, 0
        %338 = vmatprep.subr.mxu0 0.0
        %339 = vmatpush1.msra.mxu0 %v287
        %340 = vmatprep.subr.mxu0 0.0
        %341 = vmatpush1.msra.mxu0 %v288
        %342 = vmatprep.subr.mxu0 0.0
        %343 = vmatpush1.msra.mxu0 0.0
        %344 = vmatprep.subr.mxu0 0.0
        %345 = vmatpush1.msra.mxu0 0.0
        %346 = vmatprep.subr.mxu0 0.0
        %347 = vmatpush1.msra.mxu0 0.0
        %348 = vmatprep.subr.mxu0 0.0
        %349 = vmatpush1.msra.mxu0 0.0
        %350 = vmatprep.subr.mxu0 0.0
        %351 = vmatpush1.msra.mxu0 0.0
        %352 = vmatprep.subr.mxu0 0.0
        %353 = vmatpush1.msra.mxu0 0.0
        %354 = vmatprep.subr.mxu0 0.0
        %355 = vmatpush1.msra.mxu0 0.0
        %356 = vmatprep.subr.mxu0 0.0
        %357 = vmatpush1.msra.mxu0 0.0
        %358 = vmatprep.subr.mxu0 0.0
        %359 = vmatpush1.msra.mxu0 0.0
        %360 = vmatprep.subr.mxu0 0.0
        %361 = vmatpush1.msra.mxu0 0.0
        %362 = vmatprep.subr.mxu0 0.0
        %363 = vmatpush1.msra.mxu0 0.0
        %364 = vmatprep.subr.mxu0 0.0
        %365 = vmatpush1.msra.mxu0 0.0
        %366 = vmatprep.subr.mxu0 0.0
        %367 = vmatpush1.msra.mxu0 0.0
        %368 = vmatprep.subr.mxu0 0.0
        %369 = vmatpush1.msra.mxu0 0.0
        %370 = vmatprep.subr.mxu0 0.0
        %371 = vmatpush1.msra.mxu0 0.0
        %372 = vmatprep.subr.mxu0 0.0
        %373 = vmatpush1.msra.mxu0 0.0
        %374 = vmatprep.subr.mxu0 0.0
        %375 = vmatpush1.msra.mxu0 0.0
        %376 = vmatprep.subr.mxu0 0.0
        %377 = vmatpush1.msra.mxu0 0.0
        %378 = vmatprep.subr.mxu0 0.0
        %379 = vmatpush1.msra.mxu0 0.0
        %380 = vmatprep.subr.mxu0 0.0
        %381 = vmatpush1.msra.mxu0 0.0
        %382 = vmatprep.subr.mxu0 0.0
        %383 = vmatpush1.msra.mxu0 0.0
        %384 = vmatprep.subr.mxu0 0.0
        %385 = vmatpush1.msra.mxu0 0.0
        %386 = vmatprep.subr.mxu0 0.0
        %387 = vmatpush1.msra.mxu0 0.0
        %388 = vmatprep.subr.mxu0 0.0
        %389 = vmatpush1.msra.mxu0 0.0
        %390 = vmatprep.subr.mxu0 0.0
        %391 = vmatpush1.msra.mxu0 0.0
        %392 = vmatprep.subr.mxu0 0.0
        %393 = vmatpush1.msra.mxu0 0.0
        %394 = vmatprep.subr.mxu0 0.0
        %395 = vmatpush1.msra.mxu0 0.0
        %396 = vmatprep.subr.mxu0 0.0
        %397 = vmatpush1.msra.mxu0 0.0
        %398 = vmatprep.subr.mxu0 0.0
        %399 = vmatpush1.msra.mxu0 0.0
        %400 = vmatprep.subr.mxu0 0.0
        %401 = vmatpush1.msra.mxu0 0.0
        %402 = vmatprep.mubr.f32.mxu0 0.0
        %403 = vmatmul.mubr.f32.gmra.mrb[0].mxu0 %v291
        %v404 = vpop.f32.mrb[0].mxu0
        %v405 = vadd.f32 0.0, %v404
        %v406 = vpop.f32.mrb[0].mxu0
        %407 = vmatprep.mubr.f32.mxu0 0.0
        %408 = vmatmul.mubr.f32.gmra.mrb[0].mxu0 %v294
        %v409 = vpop.f32.mrb[0].mxu0
        %v410 = vadd.f32 0.0, %v409
        %v411 = vpop.f32.mrb[0].mxu0
        %412 = vmatprep.mubr.f32.mxu0 0.0
        %413 = vmatmul.mubr.f32.gmra.mrb[0].mxu0 %v297
        %v414 = vpop.f32.mrb[0].mxu0
        %v415 = vadd.f32 0.0, %v414
        %v416 = vpop.f32.mrb[0].mxu0
        %417 = vmatprep.mubr.f32.mxu0 0.0
        %418 = vmatmul.mubr.f32.gmra.mrb[0].mxu0 %v300
        %v419 = vpop.f32.mrb[0].mxu0
        %v420 = vadd.f32 0.0, %v419
        %v421 = vpop.f32.mrb[0].mxu0
        %422 = vmatprep.mubr.f32.mxu0 0.0
        %423 = vmatmul.mubr.f32.gmra.mrb[0].mxu0 %v303
        %v424 = vpop.f32.mrb[0].mxu0
        %v425 = vadd.f32 0.0, %v424
        %v426 = vpop.f32.mrb[0].mxu0
        %427 = vmatprep.mubr.f32.mxu0 0.0
        %428 = vmatmul.mubr.f32.gmra.mrb[0].mxu0 %v306
        %v429 = vpop.f32.mrb[0].mxu0
        %v430 = vadd.f32 0.0, %v429
        %v431 = vpop.f32.mrb[0].mxu0
        %432 = vmatprep.mubr.f32.mxu0 0.0
        %433 = vmatmul.mubr.f32.gmra.mrb[0].mxu0 %v309
        %v434 = vpop.f32.mrb[0].mxu0
        %v435 = vadd.f32 0.0, %v434
        %v436 = vpop.f32.mrb[0].mxu0
        %437 = vmatprep.mubr.f32.mxu0 0.0
        %438 = vmatmul.mubr.f32.gmra.mrb[0].mxu0 %v312
        %v439 = vpop.f32.mrb[0].mxu0
        %v440 = vadd.f32 0.0, %v439
        %v441 = vpop.f32.mrb[0].mxu0
        %442 = vmatprep.mubr.f32.mxu0 0.0
        %443 = vmatmul.mubr.f32.gmra.mrb[0].mxu0 %v315
        %v444 = vpop.f32.mrb[0].mxu0
        %v445 = vadd.f32 0.0, %v444
        %v446 = vpop.f32.mrb[0].mxu0
        %447 = vmatprep.mubr.f32.mxu0 0.0
        %448 = vmatmul.mubr.f32.gmra.mrb[0].mxu0 %v318
        %v449 = vpop.f32.mrb[0].mxu0
        %v450 = vadd.f32 0.0, %v449
        %v451 = vpop.f32.mrb[0].mxu0
        %452 = vmatprep.mubr.f32.mxu0 0.0
        %453 = vmatmul.mubr.f32.gmra.mrb[0].mxu0 %v321
        %v454 = vpop.f32.mrb[0].mxu0
        %v455 = vadd.f32 0.0, %v454
        %v456 = vpop.f32.mrb[0].mxu0
        %457 = vmatprep.mubr.f32.mxu0 0.0
        %458 = vmatmul.mubr.f32.gmra.mrb[0].mxu0 %v324
        %v459 = vpop.f32.mrb[0].mxu0
        %v460 = vadd.f32 0.0, %v459
        %v461 = vpop.f32.mrb[0].mxu0
        %462 = vmatprep.mubr.f32.mxu0 0.0
        %463 = vmatmul.mubr.f32.gmra.mrb[0].mxu0 %v327
        %v464 = vpop.f32.mrb[0].mxu0
        %v465 = vadd.f32 0.0, %v464
        %v466 = vpop.f32.mrb[0].mxu0
        %467 = vmatprep.mubr.f32.mxu0 0.0
        %468 = vmatmul.mubr.f32.gmra.mrb[0].mxu0 %v330
        %v469 = vpop.f32.mrb[0].mxu0
        %v470 = vadd.f32 0.0, %v469
        %v471 = vpop.f32.mrb[0].mxu0
        %472 = vmatprep.mubr.f32.mxu0 0.0
        %473 = vmatmul.mubr.f32.gmra.mrb[0].mxu0 %v333
        %v474 = vpop.f32.mrb[0].mxu0
        %v475 = vadd.f32 0.0, %v474
        %v476 = vpop.f32.mrb[0].mxu0
        %477 = vmatprep.mubr.f32.mxu0 0.0
        %478 = vmatmul.mubr.f32.gmra.mrb[0].mxu0 %v336
        %v479 = vpop.f32.mrb[0].mxu0
        %v480 = vadd.f32 0.0, %v479
        %v481 = vpop.f32.mrb[0].mxu0
        %482 = vdwg.mxu0
        %v499 = vunpack.c.l.b16 %v249
        %v500 = vunpack.c.l.b16 %v250
        %v501 = vunpack.c.l.b16 %v251
        %v502 = vunpack.c.l.b16 %v252
        %v503 = vunpack.c.l.b16 %v253
        %v504 = vunpack.c.l.b16 %v254
        %v505 = vunpack.c.l.b16 %v255
        %v506 = vunpack.c.l.b16 %v256
        %v507 = vunpack.c.l.b16 %v257
        %v508 = vunpack.c.l.b16 %v258
        %v509 = vunpack.c.l.b16 %v259
        %v510 = vunpack.c.l.b16 %v260
        %v511 = vunpack.c.l.b16 %v261
        %v512 = vunpack.c.l.b16 %v262
        %v513 = vunpack.c.l.b16 %v263
        %v514 = vunpack.c.l.b16 %v264
        %v515 = vpack.c.b16 %v500, %v499
        %v516 = vpack.c.b16 %v502, %v501
        %v517 = vpack.c.b16 %v504, %v503
        %v518 = vpack.c.b16 %v506, %v505
        %v519 = vpack.c.b16 %v508, %v507
        %v520 = vpack.c.b16 %v510, %v509
        %v521 = vpack.c.b16 %v512, %v511
        %v522 = vpack.c.b16 %v514, %v513
        %v529 = vunpack.c.l.b16 %v265
        %v530 = vunpack.c.l.b16 %v266
        %v531 = vunpack.c.l.b16 %v267
        %v532 = vunpack.c.l.b16 %v268
        %v533 = vunpack.c.l.b16 %v269
        %v534 = vunpack.c.l.b16 %v270
        %v535 = vpack.c.b16 %v530, %v529
        %v536 = vpack.c.b16 %v532, %v531
        %v537 = vpack.c.b16 %v534, %v533
        %vm541 = vcmask 392192
        %v543 = vsel %vm541, %v515, 0
        %v546 = vsel %vm541, %v516, 0
        %v549 = vsel %vm541, %v517, 0
        %v552 = vsel %vm541, %v518, 0
        %v555 = vsel %vm541, %v519, 0
        %v558 = vsel %vm541, %v520, 0
        %v561 = vsel %vm541, %v521, 0
        %v564 = vsel %vm541, %v522, 0
        %566 = vmatprep.subr.bf16.mxu0 0
        %567 = vmatpush1.bf16.msra.mxu0 %v535
        %568 = vmatprep.subr.bf16.mxu0 0
        %569 = vmatpush1.bf16.msra.mxu0 %v536
        %570 = vmatprep.subr.bf16.mxu0 0
        %571 = vmatpush1.bf16.msra.mxu0 %v537
        %572 = vmatprep.subr.bf16.mxu0 0
        %573 = vmatpush1.bf16.msra.mxu0 0
        %574 = vmatprep.subr.bf16.mxu0 0
        %575 = vmatpush1.bf16.msra.mxu0 0
        %576 = vmatprep.subr.bf16.mxu0 0
        %577 = vmatpush1.bf16.msra.mxu0 0
        %578 = vmatprep.subr.bf16.mxu0 0
        %579 = vmatpush1.bf16.msra.mxu0 0
        %580 = vmatprep.subr.bf16.mxu0 0
        %581 = vmatpush1.bf16.msra.mxu0 0
        %582 = vmatprep.subr.bf16.mxu0 0
        %583 = vmatpush1.bf16.msra.mxu0 0
        %584 = vmatprep.subr.bf16.mxu0 0
        %585 = vmatpush1.bf16.msra.mxu0 0
        %586 = vmatprep.subr.bf16.mxu0 0
        %587 = vmatpush1.bf16.msra.mxu0 0
        %588 = vmatprep.subr.bf16.mxu0 0
        %589 = vmatpush1.bf16.msra.mxu0 0
        %590 = vmatprep.subr.bf16.mxu0 0
        %591 = vmatpush1.bf16.msra.mxu0 0
        %592 = vmatprep.subr.bf16.mxu0 0
        %593 = vmatpush1.bf16.msra.mxu0 0
        %594 = vmatprep.subr.bf16.mxu0 0
        %595 = vmatpush1.bf16.msra.mxu0 0
        %596 = vmatprep.subr.bf16.mxu0 0
        %597 = vmatpush1.bf16.msra.mxu0 0
        %598 = vmatprep.mubr.bf16.mxu0 0
        %599 = vmatmul.mubr.bf16.gmra.mrb[0].mxu0 %v543
        %v600 = vpop.f32.mrb[0].mxu0
        %v601 = vadd.f32 %v405, %v600
        %v602 = vpop.f32.mrb[0].mxu0
        %v603 = vpop.f32.mrb[0].mxu0
        %v604 = vadd.f32 %v410, %v603
        %v605 = vpop.f32.mrb[0].mxu0
        %606 = vmatprep.mubr.bf16.mxu0 0
        %607 = vmatmul.mubr.bf16.gmra.mrb[0].mxu0 %v546
        %v608 = vpop.f32.mrb[0].mxu0
        %v609 = vadd.f32 %v415, %v608
        %v610 = vpop.f32.mrb[0].mxu0
        %v611 = vpop.f32.mrb[0].mxu0
        %v612 = vadd.f32 %v420, %v611
        %v613 = vpop.f32.mrb[0].mxu0
        %614 = vmatprep.mubr.bf16.mxu0 0
        %615 = vmatmul.mubr.bf16.gmra.mrb[0].mxu0 %v549
        %v616 = vpop.f32.mrb[0].mxu0
        %v617 = vadd.f32 %v425, %v616
        %v618 = vpop.f32.mrb[0].mxu0
        %v619 = vpop.f32.mrb[0].mxu0
        %v620 = vadd.f32 %v430, %v619
        %v621 = vpop.f32.mrb[0].mxu0
        %622 = vmatprep.mubr.bf16.mxu0 0
        %623 = vmatmul.mubr.bf16.gmra.mrb[0].mxu0 %v552
        %v624 = vpop.f32.mrb[0].mxu0
        %v625 = vadd.f32 %v435, %v624
        %v626 = vpop.f32.mrb[0].mxu0
        %v627 = vpop.f32.mrb[0].mxu0
        %v628 = vadd.f32 %v440, %v627
        %v629 = vpop.f32.mrb[0].mxu0
        %630 = vmatprep.mubr.bf16.mxu0 0
        %631 = vmatmul.mubr.bf16.gmra.mrb[0].mxu0 %v555
        %v632 = vpop.f32.mrb[0].mxu0
        %v633 = vadd.f32 %v445, %v632
        %v634 = vpop.f32.mrb[0].mxu0
        %v635 = vpop.f32.mrb[0].mxu0
        %v636 = vadd.f32 %v450, %v635
        %v637 = vpop.f32.mrb[0].mxu0
        %638 = vmatprep.mubr.bf16.mxu0 0
        %639 = vmatmul.mubr.bf16.gmra.mrb[0].mxu0 %v558
        %v640 = vpop.f32.mrb[0].mxu0
        %v641 = vadd.f32 %v455, %v640
        %v642 = vpop.f32.mrb[0].mxu0
        %v643 = vpop.f32.mrb[0].mxu0
        %v644 = vadd.f32 %v460, %v643
        %v645 = vpop.f32.mrb[0].mxu0
        %646 = vmatprep.mubr.bf16.mxu0 0
        %647 = vmatmul.mubr.bf16.gmra.mrb[0].mxu0 %v561
        %v648 = vpop.f32.mrb[0].mxu0
        %v649 = vadd.f32 %v465, %v648
        %v650 = vpop.f32.mrb[0].mxu0
        %v651 = vpop.f32.mrb[0].mxu0
        %v652 = vadd.f32 %v470, %v651
        %v653 = vpop.f32.mrb[0].mxu0
        %654 = vmatprep.mubr.bf16.mxu0 0
        %655 = vmatmul.mubr.bf16.gmra.mrb[0].mxu0 %v564
        %v656 = vpop.f32.mrb[0].mxu0
        %v657 = vadd.f32 %v475, %v656
        %v658 = vpop.f32.mrb[0].mxu0
        %v659 = vpop.f32.mrb[0].mxu0
        %v660 = vadd.f32 %v480, %v659
        %v661 = vpop.f32.mrb[0].mxu0
        %662 = vdwg.mxu0
        %v663 = vxor.u32 %v601, 2147483648
        %v664 = vxor.u32 %v604, 2147483648
        %v665 = vxor.u32 %v609, 2147483648
        %v666 = vxor.u32 %v612, 2147483648
        %v667 = vxor.u32 %v617, 2147483648
        %v668 = vxor.u32 %v620, 2147483648
        %v669 = vxor.u32 %v625, 2147483648
        %v670 = vxor.u32 %v628, 2147483648
        %v671 = vxor.u32 %v633, 2147483648
        %v672 = vxor.u32 %v636, 2147483648
        %v673 = vxor.u32 %v641, 2147483648
        %v674 = vxor.u32 %v644, 2147483648
        %v675 = vxor.u32 %v649, 2147483648
        %v676 = vxor.u32 %v652, 2147483648
        %v677 = vxor.u32 %v657, 2147483648
        %v678 = vxor.u32 %v660, 2147483648
        %v679 = vmul.f32 %v663, 1.442695
        %v680 = vpow.pop %v679
        %v681 = vmul.f32 %v664, 1.442695
        %v682 = vpow.pop %v681
        %v683 = vmul.f32 %v665, 1.442695
        %v684 = vpow.pop %v683
        %v685 = vmul.f32 %v666, 1.442695
        %v686 = vpow.pop %v685
        %v687 = vmul.f32 %v667, 1.442695
        %v688 = vpow.pop %v687
        %v689 = vmul.f32 %v668, 1.442695
        %v690 = vpow.pop %v689
        %v691 = vmul.f32 %v669, 1.442695
        %v692 = vpow.pop %v691
        %v693 = vmul.f32 %v670, 1.442695
        %v694 = vpow.pop %v693
        %v695 = vmul.f32 %v671, 1.442695
        %v696 = vpow.pop %v695
        %v697 = vmul.f32 %v672, 1.442695
        %v698 = vpow.pop %v697
        %v699 = vmul.f32 %v673, 1.442695
        %v700 = vpow.pop %v699
        %v701 = vmul.f32 %v674, 1.442695
        %v702 = vpow.pop %v701
        %v703 = vmul.f32 %v675, 1.442695
        %v704 = vpow.pop %v703
        %v705 = vmul.f32 %v676, 1.442695
        %v706 = vpow.pop %v705
        %v707 = vmul.f32 %v677, 1.442695
        %v708 = vpow.pop %v707
        %v709 = vmul.f32 %v678, 1.442695
        %v710 = vpow.pop %v709
        %v711 = vadd.f32 %v680, 1.0
        %v712 = vadd.f32 %v682, 1.0
        %v713 = vadd.f32 %v684, 1.0
        %v714 = vadd.f32 %v686, 1.0
        %v715 = vadd.f32 %v688, 1.0
        %v716 = vadd.f32 %v690, 1.0
        %v717 = vadd.f32 %v692, 1.0
        %v718 = vadd.f32 %v694, 1.0
        %v719 = vadd.f32 %v696, 1.0
        %v720 = vadd.f32 %v698, 1.0
        %v721 = vadd.f32 %v700, 1.0
        %v722 = vadd.f32 %v702, 1.0
        %v723 = vadd.f32 %v704, 1.0
        %v724 = vadd.f32 %v706, 1.0
        %v725 = vadd.f32 %v708, 1.0
        %v726 = vadd.f32 %v710, 1.0
        %v727 = vrcp.pop %v711
        %v728 = vmul.f32 1.0, %v727
        %v729 = vrcp.pop %v712
        %v730 = vmul.f32 1.0, %v729
        %v731 = vrcp.pop %v713
        %v732 = vmul.f32 1.0, %v731
        %v733 = vrcp.pop %v714
        %v734 = vmul.f32 1.0, %v733
        %v735 = vrcp.pop %v715
        %v736 = vmul.f32 1.0, %v735
        %v737 = vrcp.pop %v716
        %v738 = vmul.f32 1.0, %v737
        %v739 = vrcp.pop %v717
        %v740 = vmul.f32 1.0, %v739
        %v741 = vrcp.pop %v718
        %v742 = vmul.f32 1.0, %v741
        %v743 = vrcp.pop %v719
        %v744 = vmul.f32 1.0, %v743
        %v745 = vrcp.pop %v720
        %v746 = vmul.f32 1.0, %v745
        %v747 = vrcp.pop %v721
        %v748 = vmul.f32 1.0, %v747
        %v749 = vrcp.pop %v722
        %v750 = vmul.f32 1.0, %v749
        %v751 = vrcp.pop %v723
        %v752 = vmul.f32 1.0, %v751
        %v753 = vrcp.pop %v724
        %v754 = vmul.f32 1.0, %v753
        %v755 = vrcp.pop %v725
        %v756 = vmul.f32 1.0, %v755
        %v757 = vrcp.pop %v726
        %v758 = vmul.f32 1.0, %v757
        %v759 = vlaneseq
        %v760 = vand.u32 %v759, 127
        %vm761 = vcmp.lt.s32.totalorder %v760, 8
        %v762 = vsel %vm761, %v601, -1e+30
        %v763 = vsel %vm761, %v604, -1e+30
        %v764 = vsel %vm761, %v609, -1e+30
        %v765 = vsel %vm761, %v612, -1e+30
        %v766 = vsel %vm761, %v617, -1e+30
        %v767 = vsel %vm761, %v620, -1e+30
        %v768 = vsel %vm761, %v625, -1e+30
        %v769 = vsel %vm761, %v628, -1e+30
        %v770 = vsel %vm761, %v633, -1e+30
        %v771 = vsel %vm761, %v636, -1e+30
        %v772 = vsel %vm761, %v641, -1e+30
        %v773 = vsel %vm761, %v644, -1e+30
        %v774 = vsel %vm761, %v649, -1e+30
        %v775 = vsel %vm761, %v652, -1e+30
        %v776 = vsel %vm761, %v657, -1e+30
        %v777 = vsel %vm761, %v660, -1e+30
        %778 = vmax.xlane.f32.xlu0 %v762
        %v779 = vpop.xlane.xlu0 %778
        %780 = vmax.xlane.f32.xlu0 %v763
        %v781 = vpop.xlane.xlu0 %780
        %782 = vmax.xlane.f32.xlu0 %v764
        %v783 = vpop.xlane.xlu0 %782
        %784 = vmax.xlane.f32.xlu0 %v765
        %v785 = vpop.xlane.xlu0 %784
        %786 = vmax.xlane.f32.xlu0 %v766
        %v787 = vpop.xlane.xlu0 %786
        %788 = vmax.xlane.f32.xlu0 %v767
        %v789 = vpop.xlane.xlu0 %788
        %790 = vmax.xlane.f32.xlu0 %v768
        %v791 = vpop.xlane.xlu0 %790
        %792 = vmax.xlane.f32.xlu0 %v769
        %v793 = vpop.xlane.xlu0 %792
        %794 = vmax.xlane.f32.xlu0 %v770
        %v795 = vpop.xlane.xlu0 %794
        %796 = vmax.xlane.f32.xlu0 %v771
        %v797 = vpop.xlane.xlu0 %796
        %798 = vmax.xlane.f32.xlu0 %v772
        %v799 = vpop.xlane.xlu0 %798
        %800 = vmax.xlane.f32.xlu0 %v773
        %v801 = vpop.xlane.xlu0 %800
        %802 = vmax.xlane.f32.xlu0 %v774
        %v803 = vpop.xlane.xlu0 %802
        %804 = vmax.xlane.f32.xlu0 %v775
        %v805 = vpop.xlane.xlu0 %804
        %806 = vmax.xlane.f32.xlu0 %v776
        %v807 = vpop.xlane.xlu0 %806
        %808 = vmax.xlane.f32.xlu0 %v777
        %v809 = vpop.xlane.xlu0 %808
        %v810 = vsub.f32 %v762, %v779
        %v811 = vsub.f32 %v763, %v781
        %v812 = vsub.f32 %v764, %v783
        %v813 = vsub.f32 %v765, %v785
        %v814 = vsub.f32 %v766, %v787
        %v815 = vsub.f32 %v767, %v789
        %v816 = vsub.f32 %v768, %v791
        %v817 = vsub.f32 %v769, %v793
        %v818 = vsub.f32 %v770, %v795
        %v819 = vsub.f32 %v771, %v797
        %v820 = vsub.f32 %v772, %v799
        %v821 = vsub.f32 %v773, %v801
        %v822 = vsub.f32 %v774, %v803
        %v823 = vsub.f32 %v775, %v805
        %v824 = vsub.f32 %v776, %v807
        %v825 = vsub.f32 %v777, %v809
        %v826 = vmul.f32 %v810, 1.442695
        %v827 = vpow.pop %v826
        %v828 = vmul.f32 %v811, 1.442695
        %v829 = vpow.pop %v828
        %v830 = vmul.f32 %v812, 1.442695
        %v831 = vpow.pop %v830
        %v832 = vmul.f32 %v813, 1.442695
        %v833 = vpow.pop %v832
        %v834 = vmul.f32 %v814, 1.442695
        %v835 = vpow.pop %v834
        %v836 = vmul.f32 %v815, 1.442695
        %v837 = vpow.pop %v836
        %v838 = vmul.f32 %v816, 1.442695
        %v839 = vpow.pop %v838
        %v840 = vmul.f32 %v817, 1.442695
        %v841 = vpow.pop %v840
        %v842 = vmul.f32 %v818, 1.442695
        %v843 = vpow.pop %v842
        %v844 = vmul.f32 %v819, 1.442695
        %v845 = vpow.pop %v844
        %v846 = vmul.f32 %v820, 1.442695
        %v847 = vpow.pop %v846
        %v848 = vmul.f32 %v821, 1.442695
        %v849 = vpow.pop %v848
        %v850 = vmul.f32 %v822, 1.442695
        %v851 = vpow.pop %v850
        %v852 = vmul.f32 %v823, 1.442695
        %v853 = vpow.pop %v852
        %v854 = vmul.f32 %v824, 1.442695
        %v855 = vpow.pop %v854
        %v856 = vmul.f32 %v825, 1.442695
        %v857 = vpow.pop %v856
        %858 = vadd.xlane.f32.xlu0 %v827
        %v859 = vpop.xlane.xlu0 %858
        %860 = vadd.xlane.f32.xlu0 %v829
        %v861 = vpop.xlane.xlu0 %860
        %862 = vadd.xlane.f32.xlu0 %v831
        %v863 = vpop.xlane.xlu0 %862
        %864 = vadd.xlane.f32.xlu0 %v833
        %v865 = vpop.xlane.xlu0 %864
        %866 = vadd.xlane.f32.xlu0 %v835
        %v867 = vpop.xlane.xlu0 %866
        %868 = vadd.xlane.f32.xlu0 %v837
        %v869 = vpop.xlane.xlu0 %868
        %870 = vadd.xlane.f32.xlu0 %v839
        %v871 = vpop.xlane.xlu0 %870
        %872 = vadd.xlane.f32.xlu0 %v841
        %v873 = vpop.xlane.xlu0 %872
        %874 = vadd.xlane.f32.xlu0 %v843
        %v875 = vpop.xlane.xlu0 %874
        %876 = vadd.xlane.f32.xlu0 %v845
        %v877 = vpop.xlane.xlu0 %876
        %878 = vadd.xlane.f32.xlu0 %v847
        %v879 = vpop.xlane.xlu0 %878
        %880 = vadd.xlane.f32.xlu0 %v849
        %v881 = vpop.xlane.xlu0 %880
        %882 = vadd.xlane.f32.xlu0 %v851
        %v883 = vpop.xlane.xlu0 %882
        %884 = vadd.xlane.f32.xlu0 %v853
        %v885 = vpop.xlane.xlu0 %884
        %886 = vadd.xlane.f32.xlu0 %v855
        %v887 = vpop.xlane.xlu0 %886
        %888 = vadd.xlane.f32.xlu0 %v857
        %v889 = vpop.xlane.xlu0 %888
        %v890 = vrcp.pop %v859
        %v891 = vrcp.pop %v861
        %v892 = vrcp.pop %v863
        %v893 = vrcp.pop %v865
        %v894 = vrcp.pop %v867
        %v895 = vrcp.pop %v869
        %v896 = vrcp.pop %v871
        %v897 = vrcp.pop %v873
        %v898 = vrcp.pop %v875
        %v899 = vrcp.pop %v877
        %v900 = vrcp.pop %v879
        %v901 = vrcp.pop %v881
        %v902 = vrcp.pop %v883
        %v903 = vrcp.pop %v885
        %v904 = vrcp.pop %v887
        %v905 = vrcp.pop %v889
        %v906 = vmul.f32 %v827, %v890
        %v907 = vmul.f32 %v829, %v891
        %v908 = vmul.f32 %v831, %v892
        %v909 = vmul.f32 %v833, %v893
        %v910 = vmul.f32 %v835, %v894
        %v911 = vmul.f32 %v837, %v895
        %v912 = vmul.f32 %v839, %v896
        %v913 = vmul.f32 %v841, %v897
        %v914 = vmul.f32 %v843, %v898
        %v915 = vmul.f32 %v845, %v899
        %v916 = vmul.f32 %v847, %v900
        %v917 = vmul.f32 %v849, %v901
        %v918 = vmul.f32 %v851, %v902
        %v919 = vmul.f32 %v853, %v903
        %v920 = vmul.f32 %v855, %v904
        %v921 = vmul.f32 %v857, %v905
        %923 = vset.pattern.permute.xlu0 8
        %924 = vperm.xlu0 %923, %v728
        %v925 = vpop.permute.xlu0 %924
        %928 = vset.pattern.permute.xlu0 8
        %929 = vperm.xlu0 %928, %v730
        %v930 = vpop.permute.xlu0 %929
        %933 = vset.pattern.permute.xlu0 8
        %934 = vperm.xlu0 %933, %v732
        %v935 = vpop.permute.xlu0 %934
        %938 = vset.pattern.permute.xlu0 8
        %939 = vperm.xlu0 %938, %v734
        %v940 = vpop.permute.xlu0 %939
        %943 = vset.pattern.permute.xlu0 8
        %944 = vperm.xlu0 %943, %v736
        %v945 = vpop.permute.xlu0 %944
        %948 = vset.pattern.permute.xlu0 8
        %949 = vperm.xlu0 %948, %v738
        %v950 = vpop.permute.xlu0 %949
        %953 = vset.pattern.permute.xlu0 8
        %954 = vperm.xlu0 %953, %v740
        %v955 = vpop.permute.xlu0 %954
        %958 = vset.pattern.permute.xlu0 8
        %959 = vperm.xlu0 %958, %v742
        %v960 = vpop.permute.xlu0 %959
        %963 = vset.pattern.permute.xlu0 8
        %964 = vperm.xlu0 %963, %v744
        %v965 = vpop.permute.xlu0 %964
        %968 = vset.pattern.permute.xlu0 8
        %969 = vperm.xlu0 %968, %v746
        %v970 = vpop.permute.xlu0 %969
        %973 = vset.pattern.permute.xlu0 8
        %974 = vperm.xlu0 %973, %v748
        %v975 = vpop.permute.xlu0 %974
        %978 = vset.pattern.permute.xlu0 8
        %979 = vperm.xlu0 %978, %v750
        %v980 = vpop.permute.xlu0 %979
        %983 = vset.pattern.permute.xlu0 8
        %984 = vperm.xlu0 %983, %v752
        %v985 = vpop.permute.xlu0 %984
        %988 = vset.pattern.permute.xlu0 8
        %989 = vperm.xlu0 %988, %v754
        %v990 = vpop.permute.xlu0 %989
        %993 = vset.pattern.permute.xlu0 8
        %994 = vperm.xlu0 %993, %v756
        %v995 = vpop.permute.xlu0 %994
        %998 = vset.pattern.permute.xlu0 8
        %999 = vperm.xlu0 %998, %v758
        %v1000 = vpop.permute.xlu0 %999
        %v1002 = vmul.f32 %v925, %v906
        %v1003 = vmul.f32 %v930, %v907
        %v1004 = vmul.f32 %v935, %v908
        %v1005 = vmul.f32 %v940, %v909
        %v1006 = vmul.f32 %v945, %v910
        %v1007 = vmul.f32 %v950, %v911
        %v1008 = vmul.f32 %v955, %v912
        %v1009 = vmul.f32 %v960, %v913
        %v1010 = vmul.f32 %v965, %v914
        %v1011 = vmul.f32 %v970, %v915
        %v1012 = vmul.f32 %v975, %v916
        %v1013 = vmul.f32 %v980, %v917
        %v1014 = vmul.f32 %v985, %v918
        %v1015 = vmul.f32 %v990, %v919
        %v1016 = vmul.f32 %v995, %v920
        %v1017 = vmul.f32 %v1000, %v921
        %v1018 = vld [vmem:[%s4] sm:$0xff]
        %v1019 = vld [vmem:[%s4 + $0x8] sm:$0xff]
        %1020 = vmatprep.subr.mxu0 0.0
        %1021 = vmatpush1.msra.mxu0 %v1002
        %1022 = vmatprep.subr.mxu0 0.0
        %1023 = vmatpush1.msra.mxu0 %v1003
        %1024 = vmatprep.subr.mxu0 0.0
        %1025 = vmatpush1.msra.mxu0 %v1004
        %1026 = vmatprep.subr.mxu0 0.0
        %1027 = vmatpush1.msra.mxu0 %v1005
        %1028 = vmatprep.subr.mxu0 0.0
        %1029 = vmatpush1.msra.mxu0 %v1006
        %1030 = vmatprep.subr.mxu0 0.0
        %1031 = vmatpush1.msra.mxu0 %v1007
        %1032 = vmatprep.subr.mxu0 0.0
        %1033 = vmatpush1.msra.mxu0 %v1008
        %1034 = vmatprep.subr.mxu0 0.0
        %1035 = vmatpush1.msra.mxu0 %v1009
        %1036 = vmatprep.subr.mxu0 0.0
        %1037 = vmatpush1.msra.mxu0 %v1010
        %1038 = vmatprep.subr.mxu0 0.0
        %1039 = vmatpush1.msra.mxu0 %v1011
        %1040 = vmatprep.subr.mxu0 0.0
        %1041 = vmatpush1.msra.mxu0 %v1012
        %1042 = vmatprep.subr.mxu0 0.0
        %1043 = vmatpush1.msra.mxu0 %v1013
        %1044 = vmatprep.subr.mxu0 0.0
        %1045 = vmatpush1.msra.mxu0 %v1014
        %1046 = vmatprep.subr.mxu0 0.0
        %1047 = vmatpush1.msra.mxu0 %v1015
        %1048 = vmatprep.subr.mxu0 0.0
        %1049 = vmatpush1.msra.mxu0 %v1016
        %1050 = vmatprep.subr.mxu0 0.0
        %1051 = vmatpush1.msra.mxu0 %v1017
        %1052 = vmatprep.subr.mxu0 0.0
        %1053 = vmatpush1.msra.mxu0 0.0
        %1054 = vmatprep.subr.mxu0 0.0
        %1055 = vmatpush1.msra.mxu0 0.0
        %1056 = vmatprep.subr.mxu0 0.0
        %1057 = vmatpush1.msra.mxu0 0.0
        %1058 = vmatprep.subr.mxu0 0.0
        %1059 = vmatpush1.msra.mxu0 0.0
        %1060 = vmatprep.subr.mxu0 0.0
        %1061 = vmatpush1.msra.mxu0 0.0
        %1062 = vmatprep.subr.mxu0 0.0
        %1063 = vmatpush1.msra.mxu0 0.0
        %1064 = vmatprep.subr.mxu0 0.0
        %1065 = vmatpush1.msra.mxu0 0.0
        %1066 = vmatprep.subr.mxu0 0.0
        %1067 = vmatpush1.msra.mxu0 0.0
        %1068 = vmatprep.subr.mxu0 0.0
        %1069 = vmatpush1.msra.mxu0 0.0
        %1070 = vmatprep.subr.mxu0 0.0
        %1071 = vmatpush1.msra.mxu0 0.0
        %1072 = vmatprep.subr.mxu0 0.0
        %1073 = vmatpush1.msra.mxu0 0.0
        %1074 = vmatprep.subr.mxu0 0.0
        %1075 = vmatpush1.msra.mxu0 0.0
        %1076 = vmatprep.subr.mxu0 0.0
        %1077 = vmatpush1.msra.mxu0 0.0
        %1078 = vmatprep.subr.mxu0 0.0
        %1079 = vmatpush1.msra.mxu0 0.0
        %1080 = vmatprep.subr.mxu0 0.0
        %1081 = vmatpush1.msra.mxu0 0.0
        %1082 = vmatprep.subr.mxu0 0.0
        %1083 = vmatpush1.msra.mxu0 0.0
        %1084 = vmatprep.mubr.f32.mxu0 0.0
        %1085 = vmatmul.mubr.f32.gmra.mrb[0].mxu0 %v1018
        %v1086 = vpop.f32.mrb[0].mxu0
        %v1087 = vadd.f32 0.0, %v1086
        %v1088 = vpop.f32.mrb[0].mxu0
        %1089 = vmatprep.mubr.f32.mxu0 0.0
        %1090 = vmatmul.mubr.f32.gmra.mrb[0].mxu0 %v1019
        %v1091 = vpop.f32.mrb[0].mxu0
        %v1092 = vadd.f32 0.0, %v1091
        %v1093 = vpop.f32.mrb[0].mxu0
        %1094 = vdwg.mxu0
        %1095 = vst [vmem:[%s234] sm:$0xff] %v1087
        %1096 = vst [vmem:[%s234 + $0x8] sm:$0xff] %v1092
        %s1097 = sand.u32 %s142, 1
        %s1098 = scalar_lea.sflag [#allocation3], %s1097
        %s1099 = sand.u32 %s142, 1
        %s1100 = smul.addr %s1099, 16
        %s1101 = scalar_lea.vmem [#allocation2], %s1100
        // Predicated region
        $region41: #{tpu_custom_call.1} parent=39 // pred_check
          %p1102 = pneg %p152
        $region42: #{tpu_custom_call.1} parent=39 // pred_check_branch
          %1104 = sbr.rel (%p1102) target = $region44
        $region43: #{tpu_custom_call.1} parent=39 // pred_region
          %s1105 = smul.u32 2, %s19
          %s1107 = ssub.s32 256, 256
          %1108 = vsyncadd %s1098, %s1107
          %s1109 = smul.addr %s1105, 128
          %s1110 = scalar_lea.hbm %s5, %s1109
          %s1111 = sshll.u32 %s1101, 4
          %s1112 = int_to_ptr.vmem [resolvable:$true] %s1111
          %1117 = dma.vmem_to_hbm [thread:$0]  %s1112, 256, %s1110, %s1098, 128, 128, 8
        $region44: #{tpu_custom_call.1} parent=39 // pred_fallthru
          _
      $region40: #{tpu_custom_call.1} parent=5 // pred_fallthru
        _
      %p1118 = scmp.le.s32.totalorder 2, %s14
      // Predicated region
      $region45: #{tpu_custom_call.1} parent=5 // pred_check
        %p1119 = pneg %p1118
      $region46: #{tpu_custom_call.1} parent=5 // pred_check_branch
        %1121 = sbr.rel (%p1119) target = $region48
      $region47: #{tpu_custom_call.1} parent=5 // pred_region
        %s1122 = ssub.s32 %s14, 2
        // Predicated region
        $region49: #{tpu_custom_call.1} parent=47 // pred_check
          %p1123 = pneg %p158
        $region50: #{tpu_custom_call.1} parent=47 // pred_check_branch
          %1125 = sbr.rel (%p1123) target = $region52
        $region51: #{tpu_custom_call.1} parent=47 // pred_region
          %s1126 = sand.u32 %s143, 1
          %s1127 = scalar_lea.sflag [#allocation3], %s1126
          %s1128 = sand.u32 %s143, 1
          %s1129 = smul.addr %s1128, 16
          %s1130 = scalar_lea.vmem [#allocation2], %s1129
          %1131 = dma.done %s1127, 256
        $region52: #{tpu_custom_call.1} parent=47 // pred_fallthru
          _
      $region48: #{tpu_custom_call.1} parent=5 // pred_fallthru
        _
    $region6: #{tpu_custom_call.1} parent=1 // loop_footer
      %s18 = sadd.s32 1, %s14
    $region7: #{tpu_custom_call.1} parent=1 // loop_footer_branch
      %13 = sbr.rel target = $region3
    $region8: #{tpu_custom_call.1} parent=1 // loop_exit
      _
    %1132 = vsyncpa [#allocation3], 1
    %s1133 = scalar_lea.sflag [#allocation3], 1
    %1134 = vsyncpa %s1133, 1

</llo_original>
